<compile_context>
chip_gen: v6e
topology: v6e:2x2x1
jax: 0.10.0
libtpu: 0.0.40
codegen_flags: <defaults>
</compile_context>

<pallas_src>
import jax
import jax.numpy as jnp
from jax import lax
from jax.experimental import pallas as pl
from jax.experimental.pallas import tpu as pltpu


_SMALL_C_FAST_PATH = 128  # below this, plain XLA fusion beats a kernel launch


def _sig_t_kernel(w_ref, out_ref):
    # Block = all C rows x TN columns (TN == C when not tiled).
    C, TN = w_ref.shape
    j0 = pl.program_id(0) * TN          # global column offset of this tile

    w = w_ref[...].astype(jnp.float32)

    # Diagonal mask via one iota-compare pair; I + sigmoid(w) * (1 - I)
    # collapses to a single select (diagonal entries are exactly 1.0).
    row = lax.broadcasted_iota(jnp.int32, (C, TN), 0)
    col = lax.broadcasted_iota(jnp.int32, (C, TN), 1) + j0
    sig = jax.nn.sigmoid(w)             # numerically stable; exp on EUP
    T = jnp.where(row == col, jnp.float32(1.0), sig)

    # F.normalize(T, p=1, dim=0): entries are non-negative, so |T| == T.
    # Every column holds one diagonal 1.0 => col_norm >= 1, so torch's
    # clamp_min(1e-12) is provably dead code. Rows are always the full C, so
    # the reduction stays inside the block; ragged column padding only affects
    # padded (masked-on-store) columns.
    col_norm = jnp.sum(T, axis=0, keepdims=True)          # (1, TN)
    inv = pl.reciprocal(col_norm, approx=False)           # exact; EUP slot
    out_ref[...] = (T * inv).astype(out_ref.dtype)


def _round_up(x, m):
    return ((x + m - 1) // m) * m


def _tpu_kind():
    try:
        return (jax.devices()[0].device_kind or "").lower()
    except Exception:
        return ""


def _select_tile(C, *, is_v7x, tile_budget_bytes):
    """Largest column tile (multiple of 128, or full C) whose in+out
    double-buffers (4 * C * tn * 4 bytes) fit the budget."""
    max_tn = tile_budget_bytes // (4 * C * 4)
    max_tn = max(128, (max_tn // 128) * 128)
    if 4 * C * C * 4 <= tile_budget_bytes:
        tn = C                                   # single full block
    else:
        tn = min(max_tn, _round_up(C, 128))      # lane-dense 128-multiple tile
    # v7x has two TensorCores: make the "parallel" column axis actually shard.
    if is_v7x and C >= 256 and tn >= C:
        tn = min(max_tn, _round_up(pl.cdiv(C, 2), 128))
    return tn


def sig_t_forward(w, *, out_dtype=jnp.float32, force_pallas=False):
    """w: (C, C) float32 parameter. Returns the column-L1-normalized
    transition matrix T = normalize(I + sigmoid(w) * (1 - I), p=1, dim=0)."""
    C = w.shape[0]

    # Small-C fast path: one tiny HBM pass, fully fusable by XLA; avoids the
    # kernel launch + masked partial stores on under-filled vregs.
    if C < _SMALL_C_FAST_PATH and not force_pallas:
        sig = jax.nn.sigmoid(w.astype(jnp.float32))
        row = lax.broadcasted_iota(jnp.int32, (C, C), 0)
        col = lax.broadcasted_iota(jnp.int32, (C, C), 1)
        T = jnp.where(row == col, jnp.float32(1.0), sig)
        T = T / jnp.sum(T, axis=0, keepdims=True)          # col_sum >= 1
        return T.astype(out_dtype)

    kind = _tpu_kind()
    is_v7x = "v7" in kind
    is_v56 = ("v5" in kind) or ("v6" in kind)

    # Per-generation tile budget (input + output, each double-buffered).
    if is_v7x:
        tile_budget = 16 << 20          # v7x: 64 MiB physical / 32 MiB scoped
        vmem_cap = 56 << 20
    elif is_v56:
        tile_budget = 64 << 20          # v5e/v6e: 128 MiB physical VMEM
        vmem_cap = 100 << 20
    else:
        tile_budget = 16 << 20          # unknown chip: stay conservative
        vmem_cap = 48 << 20

    tn = _select_tile(C, is_v7x=is_v7x, tile_budget_bytes=tile_budget)
    grid = (pl.cdiv(C, tn),)            # ragged last tile is masked on store

    needed = 4 * C * tn * 4 + (2 << 20)
    vmem_limit = min(vmem_cap, max(32 << 20, needed))

    out_bytes = 2 if out_dtype == jnp.bfloat16 else 4
    cost = pl.CostEstimate(
        flops=5 * C * C,
        transcendentals=C * C,
        bytes_accessed=C * C * (4 + out_bytes),
    )

    return pl.pallas_call(
        _sig_t_kernel,
        out_shape=jax.ShapeDtypeStruct((C, C), out_dtype),
        grid_spec=pltpu.PrefetchScalarGridSpec(
            num_scalar_prefetch=0,
            grid=grid,
            # Full rows x one column tile: the L1 reduction over rows stays
            # entirely inside each block, so no cross-block accumulator.
            in_specs=[pl.BlockSpec((C, tn), lambda j: (0, j))],
            out_specs=pl.BlockSpec((C, tn), lambda j: (0, j)),
        ),
        compiler_params=pltpu.CompilerParams(
            dimension_semantics=("parallel",),   # shard column tiles across TCs
            vmem_limit_bytes=vmem_limit,
        ),
        cost_estimate=cost,
    )(w)


def sig_t_reference(w):
    """Pure-JAX reference mirroring the PyTorch forward exactly."""
    C = w.shape[0]
    sig = jax.nn.sigmoid(w)
    eye = jnp.eye(C, dtype=jnp.float32)
    co = jnp.ones((C, C), dtype=jnp.float32) - eye
    T = eye + sig * co
    norm = jnp.clip(jnp.sum(jnp.abs(T), axis=0, keepdims=True), 1e-12, None)
    return T / norm


if __name__ == "__main__":
    _ = jax.random.PRNGKey(0)  # deterministic setup; parameter init is fixed

    # Module-representative size (num_classes=32): init w = -2 * ones(C, C).
    C_small = 32
    w_small = -2.0 * jnp.ones((C_small, C_small), dtype=jnp.float32)

    # 1) default path (small-C fast path, XLA-fused)
    T_fast = jax.block_until_ready(sig_t_forward(w_small))
    # 2) same shape forced through the Pallas kernel
    T_pallas_small = jax.block_until_ready(sig_t_forward(w_small, force_pallas=True))

    T_ref_small = sig_t_reference(w_small)
    assert T_fast.shape == (C_small, C_small)
    assert jnp.allclose(T_fast, T_ref_small, atol=1e-6)
    assert jnp.allclose(T_pallas_small, T_ref_small, atol=1e-6)
    assert jnp.allclose(jnp.sum(T_pallas_small, axis=0),
                        jnp.ones((C_small,)), atol=1e-6)

    # 3) larger size exercising the tiled Pallas path (2 column tiles on v7x).
    C_big = 256
    w_big = -2.0 * jnp.ones((C_big, C_big), dtype=jnp.float32)
    T_big = jax.block_until_ready(sig_t_forward(w_big))
    T_ref_big = sig_t_reference(w_big)
    assert T_big.shape == (C_big, C_big)
    assert jnp.allclose(T_big, T_ref_big, atol=1e-6)
    assert jnp.allclose(jnp.sum(T_big, axis=0), jnp.ones((C_big,)), atol=1e-6)

    print("KERNEL_OK")
</pallas_src>

<mosaic_0001>
module attributes {stable_mosaic.version = 11 : i64} {
  func.func @_sig_t_kernel(%arg0: i32, %arg1: memref<32x32xf32, #tpu.memory_space<vmem>>, %arg2: memref<32x32xf32, #tpu.memory_space<vmem>>) attributes {dimension_semantics = [#tpu.dimension_semantics<parallel>], iteration_bounds = array<i64: 1>, scalar_prefetch = 0 : i64, scratch_operands = 0 : i64, tpu.core_type = #tpu.core_type<tc>, window_params = [{transform_indices = @transform_0, window_bounds = array<i64: 32, 32>}, {transform_indices = @transform_1, window_bounds = array<i64: 32, 32>}]} {
    %c32_i32 = arith.constant 32 : i32
    %0 = arith.muli %arg0, %c32_i32 : i32
    %c0 = arith.constant 0 : index
    %c0_0 = arith.constant 0 : index
    %1 = vector.load %arg1[%c0, %c0_0] : memref<32x32xf32, #tpu.memory_space<vmem>>, vector<32x32xf32>
    %2 = tpu.iota {dimensions = array<i32: 0>} : vector<32x32xi32>
    %3 = tpu.iota {dimensions = array<i32: 1>} : vector<32x32xi32>
    %4 = vector.broadcast %0 : i32 to vector<32x32xi32>
    %5 = arith.addi %3, %4 : vector<32x32xi32>
    %6 = arith.negf %1 : vector<32x32xf32>
    %7 = math.exp %6 : vector<32x32xf32>
    %cst = arith.constant 1.000000e+00 : f32
    %8 = vector.broadcast %cst : f32 to vector<32x32xf32>
    %9 = arith.addf %8, %7 : vector<32x32xf32>
    %10 = arith.divf %8, %9 : vector<32x32xf32>
    %11 = arith.cmpi eq, %2, %5 : vector<32x32xi32>
    %cst_1 = arith.constant 1.000000e+00 : f32
    %12 = vector.broadcast %cst_1 : f32 to vector<32x32xf32>
    %13 = arith.select %11, %12, %10 : vector<32x32xi1>, vector<32x32xf32>
    %cst_2 = arith.constant dense<0.000000e+00> : vector<32xf32>
    %14 = vector.multi_reduction <add>, %13, %cst_2 [0] : vector<32x32xf32> to vector<32xf32>
    %15 = vector.shape_cast %14 : vector<32xf32> to vector<1x32xf32>
    %16 = tpu.reciprocal %15 : vector<1x32xf32> -> vector<1x32xf32>
    %17 = vector.broadcast %16 : vector<1x32xf32> to vector<32x32xf32>
    %18 = arith.mulf %13, %17 : vector<32x32xf32>
    %c0_3 = arith.constant 0 : index
    %c0_4 = arith.constant 0 : index
    %19 = vector.load %arg2[%c0_3, %c0_4] : memref<32x32xf32, #tpu.memory_space<vmem>>, vector<32x32xf32>
    tpu.vector_store %arg2[%c0_3, %c0_4], %18 {strides = array<i32>} : memref<32x32xf32, #tpu.memory_space<vmem>>, vector<32x32xf32>,
    return
  }
  func.func @transform_0(%arg0: i32) -> (i32, i32) {
    %c0_i32 = arith.constant 0 : i32
    %c0_i32_0 = arith.constant 0 : i32
    return %c0_i32, %arg0 : i32, i32
  }
  func.func @transform_1(%arg0: i32) -> (i32, i32) {
    %c0_i32 = arith.constant 0 : i32
    %c0_i32_0 = arith.constant 0 : i32
    return %c0_i32, %arg0 : i32, i32
  }
}

</mosaic_0001>

<llo_original>
// kernel: tpu_custom_call.1
$region0: #{tpu_custom_call.1}
  #allocation0 [shape = 'u32[]', space=smem, size = 0x4, offset = 0x4, fixed_abs, tag = 'smem constant byte address 0x4 - core index']
  #allocation1 [shape = 'u32[144,128]{1,0:T(1,128)}', space=vmem, size = 0x12000, scoped, tag = 'internal scratch']
  %s0 = inlined_call_operand.hbm [shape: f32[32,32], index: 0, kind: input, shape index: {}]
  %s1 = inlined_call_operand.hbm [shape: f32[32,32], index: 1, kind: output, shape index: {}]
  %s2 = sld [smem:[#allocation0]]
  $region18: #{tpu_custom_call.1} parent=0
    _
  %s4 = ssub.s32 1, %s2
  %s5 = scalar_select 0, %s4, %s2
  $region1: #{tpu_custom_call.1} parent=0
    #allocation2 [shape = 'u8[16384]{0}', space=vmem, size = 0x4000, scoped, tag = 'input window, operand 0, single buffered']
    #allocation3 [shape = 's32[1]{0}', space=sflag, size = 0x4, scoped, tag = 'scoped memory for tpu_custom_call.1']
    #allocation4 [shape = 's32[1]{0}', space=sflag, size = 0x4, scoped, tag = 'scoped memory for tpu_custom_call.1']
    #allocation5 [shape = 'u8[16384]{0}', space=vmem, size = 0x4000, scoped, tag = 'output window, operand 0, single buffered']
    %6 = vsyncpa [#allocation3], 0
    %7 = vsyncpa [#allocation4], 0
    // Predicated region
    $region2: #{tpu_custom_call.1} parent=1 // pred_check
      _
    $region3: #{tpu_custom_call.1} parent=1 // pred_check_branch
      %9 = sbr.rel (0) target = $region5
    $region4: #{tpu_custom_call.1} parent=1 // pred_region
      %s11 = ssub.s32 512, 512
      %12 = vsyncadd [#allocation3], %s11
      %s13 = sshll.u32 [#allocation2], 4
      %s14 = int_to_ptr.vmem [resolvable:$true] %s13
      %19 = dma.hbm_to_vmem [thread:$0]  %s0, 512, %s14, [#allocation3], 128, 128, 8
    $region5: #{tpu_custom_call.1} parent=1 // pred_fallthru
      _
    // Predicated region
    $region6: #{tpu_custom_call.1} parent=1 // pred_check
      _
    $region7: #{tpu_custom_call.1} parent=1 // pred_check_branch
      %21 = sbr.rel (0) target = $region9
    $region8: #{tpu_custom_call.1} parent=1 // pred_region
      %22 = dma.done [#allocation3], 512
    $region9: #{tpu_custom_call.1} parent=1 // pred_fallthru
      _
    %s23 = smul.u32 0, 32
    %v24 = vld [vmem:[#allocation2] sm:$0xff]
    %v25 = vld [vmem:[#allocation2 + $0x8] sm:$0xff]
    %v26 = vld [vmem:[#allocation2 + $0x10] sm:$0xff]
    %v27 = vld [vmem:[#allocation2 + $0x18] sm:$0xff]
    %v28 = vlaneseq
    %v29 = vshrl.u32 %v28, 7
    %v30 = vadd.s32 %v29, 8
    %v31 = vadd.s32 %v29, 16
    %v32 = vadd.s32 %v29, 24
    %v33 = vlaneseq
    %v34 = vand.u32 %v33, 127
    %v35 = vstv %s23
    %v36 = vadd.s32 %v34, %v35
    %v37 = vxor.u32 %v24, 2147483648
    %v38 = vxor.u32 %v25, 2147483648
    %v39 = vxor.u32 %v26, 2147483648
    %v40 = vxor.u32 %v27, 2147483648
    %v41 = vmul.f32 %v37, 1.442695
    %v42 = vpow.pop %v41
    %v43 = vmul.f32 %v38, 1.442695
    %v44 = vpow.pop %v43
    %v45 = vmul.f32 %v39, 1.442695
    %v46 = vpow.pop %v45
    %v47 = vmul.f32 %v40, 1.442695
    %v48 = vpow.pop %v47
    %v49 = vadd.f32 %v42, 1.0
    %v50 = vadd.f32 %v44, 1.0
    %v51 = vadd.f32 %v46, 1.0
    %v52 = vadd.f32 %v48, 1.0
    %v53 = vrcp.pop %v49
    %v54 = vmul.f32 1.0, %v53
    %v55 = vrcp.pop %v50
    %v56 = vmul.f32 1.0, %v55
    %v57 = vrcp.pop %v51
    %v58 = vmul.f32 1.0, %v57
    %v59 = vrcp.pop %v52
    %v60 = vmul.f32 1.0, %v59
    %vm61 = vcmp.eq.s32.totalorder %v29, %v36
    %vm62 = vcmp.eq.s32.totalorder %v30, %v36
    %vm63 = vcmp.eq.s32.totalorder %v31, %v36
    %vm64 = vcmp.eq.s32.totalorder %v32, %v36
    %v65 = vsel %vm61, 1.0, %v54
    %v66 = vsel %vm62, 1.0, %v56
    %v67 = vsel %vm63, 1.0, %v58
    %v68 = vsel %vm64, 1.0, %v60
    %vm69 = vcmask 261120
    %v70 = vsel %vm69, %v65, 0.0
    %v71 = vsel %vm69, %v66, 0.0
    %v72 = vadd.f32 %v70, %v71
    %v73 = vsel %vm69, %v67, 0.0
    %v74 = vadd.f32 %v72, %v73
    %v75 = vsel %vm69, %v68, 0.0
    %v76 = vadd.f32 %v74, %v75
    %v77 = vrot.slane %v76, 4
    %v78 = vadd.f32 %v76, %v77
    %v79 = vrot.slane %v78, 2
    %v80 = vadd.f32 %v78, %v79
    %v81 = vrot.slane %v80, 1
    %v82 = vadd.f32 %v80, %v81
    %v83 = vrcp.pop %v82
    %v84 = vmul.f32 %v65, %v83
    %v85 = vmul.f32 %v66, %v83
    %v86 = vmul.f32 %v67, %v83
    %v87 = vmul.f32 %v68, %v83
    %88 = vst.msk [vmem:[#allocation5] sm:$0xff] %vm69, %v84
    %89 = vst.msk [vmem:[#allocation5 + $0x8] sm:$0xff] %vm69, %v85
    %90 = vst.msk [vmem:[#allocation5 + $0x10] sm:$0xff] %vm69, %v86
    %91 = vst.msk [vmem:[#allocation5 + $0x18] sm:$0xff] %vm69, %v87
    // Predicated region
    $region10: #{tpu_custom_call.1} parent=1 // pred_check
      _
    $region11: #{tpu_custom_call.1} parent=1 // pred_check_branch
      %93 = sbr.rel (0) target = $region13
    $region12: #{tpu_custom_call.1} parent=1 // pred_region
      %s95 = ssub.s32 512, 512
      %96 = vsyncadd [#allocation4], %s95
      %s97 = sshll.u32 [#allocation5], 4
      %s98 = int_to_ptr.vmem [resolvable:$true] %s97
      %103 = dma.vmem_to_hbm [thread:$0]  %s98, 512, %s1, [#allocation4], 128, 128, 8
    $region13: #{tpu_custom_call.1} parent=1 // pred_fallthru
      _
    // Predicated region
    $region14: #{tpu_custom_call.1} parent=1 // pred_check
      _
    $region15: #{tpu_custom_call.1} parent=1 // pred_check_branch
      %105 = sbr.rel (0) target = $region17
    $region16: #{tpu_custom_call.1} parent=1 // pred_region
      %106 = dma.done [#allocation4], 512
    $region17: #{tpu_custom_call.1} parent=1 // pred_fallthru
      _
    %107 = vsyncpa [#allocation3], 1
    %108 = vsyncpa [#allocation4], 1

</llo_original>
